<compile_context>
chip_gen: v5e
topology: v5e:2x2
jax: 0.10.0
libtpu: 0.0.40
codegen_flags: <defaults>
</compile_context>

<pallas_src>
import functools

import jax
import jax.numpy as jnp
from jax.experimental import pallas as pl
from jax.experimental.pallas import tpu as pltpu


_TARGET_BLOCK_BYTES = 4 * 1024 * 1024   # ~4 MiB x tile: ~86% of HBM roofline, fits v7x budget
_VMEM_LIMIT_BYTES = 48 * 1024 * 1024    # double-buffered in+out ~16 MiB + params; < 64 MiB (v7x)
_RESIDENT_PARAM_ROW_LIMIT = 2048        # keep resident scale/shift footprint to a few MiB


def _bn_kernel(x_ref, scale_ref, shift_ref, o_ref, *, row_tile, slice_rows):
    """y = x * scale + shift, with scale/shift broadcasting against the x tile.

    slice_rows=True  -> scale/shift are full resident (rows_padded, 1) arrays;
                        slice out this row-tile's (row_tile, 1) window.
    slice_rows=False -> scale/shift blocks already match the broadcast shape
                        ((row_tile, 1) row params or (1, lane_tile) lane params).
    """
    if slice_rows:
        start = pl.multiple_of(pl.program_id(0) * row_tile, row_tile)
        sc = scale_ref[pl.ds(start, row_tile), :]
        sh = shift_ref[pl.ds(start, row_tile), :]
    else:
        sc = scale_ref[...]
        sh = shift_ref[...]
    y = x_ref[...] * sc + sh            # promotes to f32 for low-precision x
    o_ref[...] = y.astype(o_ref.dtype)


def _pick_tile(dim, cap, align):
    """Full extent if it fits under `cap`, else the largest `align`-multiple <= cap."""
    if dim <= cap:
        return dim
    return max(align, (cap // align) * align)


def pytorch_batch_norm(x, mean, var, weight, bias, eps, momentum=0.1):
    """Equivalent of F.batch_norm(x, mean, var, weight, bias, training=False, eps=eps).

    `momentum` is accepted for API parity but unused: eval-mode forward never updates
    the running statistics.
    """
    N, C, H, W = x.shape
    HW = H * W
    itemsize = jnp.dtype(x.dtype).itemsize
    sub_align = max(8, 32 // itemsize)  # dtype-aware sublane packing (8 f32 / 16 bf16 / 32 i8)

    # Fold per-channel affine params (cheap O(C) host-side work, done once).
    inv_std = jax.lax.rsqrt(var.astype(jnp.float32) + jnp.float32(eps))
    scale_1d = weight.astype(jnp.float32) * inv_std
    shift_1d = bias.astype(jnp.float32) - mean.astype(jnp.float32) * scale_1d

    compiler_params = pltpu.CompilerParams(
        dimension_semantics=("parallel", "parallel"),
        vmem_limit_bytes=_VMEM_LIMIT_BYTES,
    )
    cost = pl.CostEstimate(
        flops=2 * N * C * HW,
        transcendentals=0,
        bytes_accessed=2 * N * C * HW * itemsize + 4 * C * 4,
    )

    if HW % 128 == 0:
        # ---------- Main path: rows = N*C (sublane axis), lanes = H*W (lane-dense). ----------
        rows = N * C
        x2 = x.reshape(rows, HW)

        tr = _pick_tile(rows, 256, sub_align)
        lane_cap = max(128, (_TARGET_BLOCK_BYTES // (tr * itemsize)) // 128 * 128)
        tl = _pick_tile(HW, lane_cap, 128)
        row_tiles = pl.cdiv(rows, tr)
        lane_tiles = pl.cdiv(HW, tl)
        rows_padded = row_tiles * tr

        # Per-(n,c) row params, padded so in-kernel row slices never go OOB.
        pad = rows_padded - rows
        scale_rows = jnp.pad(jnp.tile(scale_1d, N), (0, pad)).reshape(rows_padded, 1)
        shift_rows = jnp.pad(jnp.tile(shift_1d, N), (0, pad)).reshape(rows_padded, 1)

        resident = rows_padded <= _RESIDENT_PARAM_ROW_LIMIT
        if resident:
            # Constant block index -> DMA'd once, stays resident in VMEM for the whole grid.
            param_spec = pl.BlockSpec((rows_padded, 1), lambda ri, li: (0, 0))
        else:
            # Large N*C: per-row-tile blocks (only re-DMA'd when the row tile changes,
            # since the lane axis is the inner grid axis).
            param_spec = pl.BlockSpec((tr, 1), lambda ri, li: (ri, 0))
        slice_rows = resident and row_tiles > 1

        kernel = functools.partial(_bn_kernel, row_tile=tr, slice_rows=slice_rows)
        out2 = pl.pallas_call(
            kernel,
            out_shape=jax.ShapeDtypeStruct((rows, HW), x.dtype),
            grid=(row_tiles, lane_tiles),
            in_specs=[
                pl.BlockSpec((tr, tl), lambda ri, li: (ri, li)),
                param_spec,
                param_spec,
            ],
            out_specs=pl.BlockSpec((tr, tl), lambda ri, li: (ri, li)),
            compiler_params=compiler_params,
            cost_estimate=cost,
        )(x2, scale_rows, shift_rows)
        return out2.reshape(N, C, H, W)

    # ---------- Fallback: H*W not lane-aligned (e.g. 7x7). ----------
    # Flatten C*H*W into the lane axis so stores stay lane-dense; broadcast the
    # per-channel params to per-lane on the host (tiny: C*HW*4 bytes).
    cols = C * HW
    x2 = x.reshape(N, cols)
    scale_cols = jnp.repeat(scale_1d, HW).reshape(1, cols)
    shift_cols = jnp.repeat(shift_1d, HW).reshape(1, cols)

    tr = _pick_tile(N, 256, sub_align)
    lane_cap = max(128, (_TARGET_BLOCK_BYTES // (tr * itemsize)) // 128 * 128)
    tl = _pick_tile(cols, lane_cap, 128)

    kernel = functools.partial(_bn_kernel, row_tile=tr, slice_rows=False)
    out2 = pl.pallas_call(
        kernel,
        out_shape=jax.ShapeDtypeStruct((N, cols), x.dtype),
        grid=(pl.cdiv(N, tr), pl.cdiv(cols, tl)),
        in_specs=[
            pl.BlockSpec((tr, tl), lambda ri, li: (ri, li)),
            pl.BlockSpec((1, tl), lambda ri, li: (0, li)),
            pl.BlockSpec((1, tl), lambda ri, li: (0, li)),
        ],
        out_specs=pl.BlockSpec((tr, tl), lambda ri, li: (ri, li)),
        compiler_params=compiler_params,
        cost_estimate=cost,
    )(x2, scale_cols, shift_cols)
    return out2.reshape(N, C, H, W)


if __name__ == "__main__":
    key = jax.random.PRNGKey(0)
    ks = jax.random.split(key, 5)

    eps = 1e-5
    momentum = 0.1  # unused: eval-mode forward (training=False) never touches momentum

    def ref_bn(x, mean, var, weight, bias, eps):
        m = mean[None, :, None, None]
        v = var[None, :, None, None]
        w = weight[None, :, None, None]
        b = bias[None, :, None, None]
        return (x - m) / jnp.sqrt(v + eps) * w + b

    # (2,4,16,16): main lane-dense path; (2,4,7,7): HW<128 fallback path;
    # (2,256,16,16): resident-params + in-kernel row-slice path.
    test_shapes = [(2, 4, 16, 16), (2, 4, 7, 7), (2, 256, 16, 16)]
    for (N, C, H, W) in test_shapes:
        x = jax.random.normal(ks[0], (N, C, H, W), dtype=jnp.float32)
        mean = jax.random.normal(ks[1], (C,), dtype=jnp.float32)
        var = jax.nn.softplus(jax.random.normal(ks[2], (C,), dtype=jnp.float32)) + 0.1
        weight = jax.random.normal(ks[3], (C,), dtype=jnp.float32)
        bias = jax.random.normal(ks[4], (C,), dtype=jnp.float32)

        y = pytorch_batch_norm(x, mean, var, weight, bias, eps, momentum)
        y = jax.block_until_ready(y)

        y_ref = ref_bn(x, mean, var, weight, bias, eps)
        assert y.shape == y_ref.shape, (y.shape, y_ref.shape)
        assert y.dtype == y_ref.dtype, (y.dtype, y_ref.dtype)
        max_err = float(jnp.max(jnp.abs(y - y_ref)))
        assert bool(jnp.allclose(y, y_ref, rtol=1e-5, atol=1e-5)), ((N, C, H, W), max_err)

    print("KERNEL_OK")
</pallas_src>

<mosaic_0001>
module attributes {stable_mosaic.version = 11 : i64} {
  func.func @_bn_kernel(%arg0: i32, %arg1: i32, %arg2: memref<8x256xf32, #tpu.memory_space<vmem>>, %arg3: memref<8x1xf32, #tpu.memory_space<vmem>>, %arg4: memref<8x1xf32, #tpu.memory_space<vmem>>, %arg5: memref<8x256xf32, #tpu.memory_space<vmem>>) attributes {dimension_semantics = [#tpu.dimension_semantics<parallel>, #tpu.dimension_semantics<parallel>], iteration_bounds = array<i64: 1, 1>, scalar_prefetch = 0 : i64, scratch_operands = 0 : i64, tpu.core_type = #tpu.core_type<tc>, window_params = [{transform_indices = @transform_0, window_bounds = array<i64: 8, 256>}, {pipeline_mode = #tpu.pipeline_mode<synchronous>, transform_indices = @transform_1, window_bounds = array<i64: 8, 1>}, {pipeline_mode = #tpu.pipeline_mode<synchronous>, transform_indices = @transform_2, window_bounds = array<i64: 8, 1>}, {transform_indices = @transform_3, window_bounds = array<i64: 8, 256>}]} {
    %c0 = arith.constant 0 : index
    %c0_0 = arith.constant 0 : index
    %0 = vector.load %arg3[%c0, %c0_0] : memref<8x1xf32, #tpu.memory_space<vmem>>, vector<8x1xf32>
    %c0_1 = arith.constant 0 : index
    %c0_2 = arith.constant 0 : index
    %1 = vector.load %arg4[%c0_1, %c0_2] : memref<8x1xf32, #tpu.memory_space<vmem>>, vector<8x1xf32>
    %c0_3 = arith.constant 0 : index
    %c0_4 = arith.constant 0 : index
    %2 = vector.load %arg2[%c0_3, %c0_4] : memref<8x256xf32, #tpu.memory_space<vmem>>, vector<8x256xf32>
    %3 = vector.broadcast %0 : vector<8x1xf32> to vector<8x256xf32>
    %4 = arith.mulf %2, %3 : vector<8x256xf32>
    %5 = vector.broadcast %1 : vector<8x1xf32> to vector<8x256xf32>
    %6 = arith.addf %4, %5 : vector<8x256xf32>
    %c0_5 = arith.constant 0 : index
    %c0_6 = arith.constant 0 : index
    %7 = vector.load %arg5[%c0_5, %c0_6] : memref<8x256xf32, #tpu.memory_space<vmem>>, vector<8x256xf32>
    tpu.vector_store %arg5[%c0_5, %c0_6], %6 {strides = array<i32>} : memref<8x256xf32, #tpu.memory_space<vmem>>, vector<8x256xf32>,
    return
  }
  func.func @transform_0(%arg0: i32, %arg1: i32) -> (i32, i32) {
    %c0_i32 = arith.constant 0 : i32
    return %arg0, %arg1 : i32, i32
  }
  func.func @transform_1(%arg0: i32, %arg1: i32) -> (i32, i32) {
    %c0_i32 = arith.constant 0 : i32
    %c0_i32_0 = arith.constant 0 : i32
    %c0_i32_1 = arith.constant 0 : i32
    return %c0_i32, %c0_i32_0 : i32, i32
  }
  func.func @transform_2(%arg0: i32, %arg1: i32) -> (i32, i32) {
    %c0_i32 = arith.constant 0 : i32
    %c0_i32_0 = arith.constant 0 : i32
    %c0_i32_1 = arith.constant 0 : i32
    return %c0_i32, %c0_i32_0 : i32, i32
  }
  func.func @transform_3(%arg0: i32, %arg1: i32) -> (i32, i32) {
    %c0_i32 = arith.constant 0 : i32
    return %arg0, %arg1 : i32, i32
  }
}

</mosaic_0001>

<llo_original>
// kernel: tpu_custom_call.1
$region0: #{tpu_custom_call.1}
  #allocation0 [shape = 'u32[]', space=smem, size = 0x4, offset = 0x4, fixed_abs, tag = 'smem constant byte address 0x4 - core index']
  #allocation1 [shape = 'u32[72,128]{1,0:T(1,128)}', space=vmem, size = 0x9000, scoped, tag = 'internal scratch']
  %s0 = inlined_call_operand.vmem [shape: f32[8,256], index: 0, kind: input, shape index: {}]
  %s1 = inlined_call_operand.vmem [shape: f32[8,1], index: 1, kind: input, shape index: {}]
  %s2 = inlined_call_operand.vmem [shape: f32[8,1], index: 2, kind: input, shape index: {}]
  %s3 = inlined_call_operand.hbm [shape: f32[8,256], index: 3, kind: output, shape index: {}]
  %s4 = sld [smem:[#allocation0]]
  $region22: #{tpu_custom_call.1} parent=0
    _
  %s6 = ssub.s32 1, %s4
  %s7 = scalar_select 0, %s6, %s4
  $region1: #{tpu_custom_call.1} parent=0
    #allocation2 [shape = 'u8[8192]{0}', space=vmem, size = 0x2000, scoped, tag = 'output window, operand 0, single buffered']
    #allocation3 [shape = 's32[1]{0}', space=sflag, size = 0x4, scoped, tag = 'scoped memory for tpu_custom_call.1']
    %8 = vsyncpa [#allocation3], 0
    // Predicated region
    $region2: #{tpu_custom_call.1} parent=1 // pred_check
      _
    $region3: #{tpu_custom_call.1} parent=1 // pred_check_branch
      %10 = sbr.rel (0) target = $region5
    $region4: #{tpu_custom_call.1} parent=1 // pred_region
      _
    $region5: #{tpu_custom_call.1} parent=1 // pred_fallthru
      _
    // Predicated region
    $region6: #{tpu_custom_call.1} parent=1 // pred_check
      _
    $region7: #{tpu_custom_call.1} parent=1 // pred_check_branch
      %12 = sbr.rel (0) target = $region9
    $region8: #{tpu_custom_call.1} parent=1 // pred_region
      _
    $region9: #{tpu_custom_call.1} parent=1 // pred_fallthru
      _
    // Predicated region
    $region10: #{tpu_custom_call.1} parent=1 // pred_check
      _
    $region11: #{tpu_custom_call.1} parent=1 // pred_check_branch
      %14 = sbr.rel (0) target = $region13
    $region12: #{tpu_custom_call.1} parent=1 // pred_region
      _
    $region13: #{tpu_custom_call.1} parent=1 // pred_fallthru
      _
    %v15 = vld [vmem:[%s1] sm:$0xff]
    %v16 = vld [vmem:[%s2] sm:$0xff]
    %v17 = vld [vmem:[%s0] sm:$0xff]
    %v18 = vld [vmem:[%s0 + $0x8] sm:$0xff]
    %20 = vset.pattern.permute.xlu0 0
    %21 = vperm.xlu0 %20, %v15
    %v22 = vpop.permute.xlu0 %21
    %v24 = vmul.f32 %v17, %v22
    %v25 = vmul.f32 %v18, %v22
    %27 = vset.pattern.permute.xlu0 0
    %28 = vperm.xlu0 %27, %v16
    %v29 = vpop.permute.xlu0 %28
    %v31 = vadd.f32 %v24, %v29
    %v32 = vadd.f32 %v25, %v29
    %33 = vst [vmem:[#allocation2] sm:$0xff] %v31
    %34 = vst [vmem:[#allocation2 + $0x8] sm:$0xff] %v32
    // Predicated region
    $region14: #{tpu_custom_call.1} parent=1 // pred_check
      _
    $region15: #{tpu_custom_call.1} parent=1 // pred_check_branch
      %36 = sbr.rel (0) target = $region17
    $region16: #{tpu_custom_call.1} parent=1 // pred_region
      %38 = vsyncadd [#allocation3], 0
      %s40 = sshll.u32 [#allocation2], 4
      %s41 = int_to_ptr.vmem [resolvable:$true] %s40
      %s42 = sshll.u32 %s3, 4
      %s43 = int_to_ptr.hbm [resolvable:$true] %s42
      %45 = dma.vmem_to_hbm [thread:$0]  %s41, 256, %s43, [#allocation3]
    $region17: #{tpu_custom_call.1} parent=1 // pred_fallthru
      _
    // Predicated region
    $region18: #{tpu_custom_call.1} parent=1 // pred_check
      _
    $region19: #{tpu_custom_call.1} parent=1 // pred_check_branch
      %47 = sbr.rel (0) target = $region21
    $region20: #{tpu_custom_call.1} parent=1 // pred_region
      %49 = dma.done [#allocation3], 256
    $region21: #{tpu_custom_call.1} parent=1 // pred_fallthru
      _
    %50 = vsyncpa [#allocation3], 1

</llo_original>
